<compile_context>
chip_gen: v7x
topology: tpu7x:2x2x1
jax: 0.10.0
libtpu: 0.0.40
codegen_flags: <defaults>
</compile_context>

<pallas_src>
import functools

import jax
import jax.numpy as jnp
from jax.experimental import pallas as pl
from jax.experimental.pallas import tpu as pltpu

LN_EPS = 1e-5


def _vmem_capacity_bytes():
    """Physical VMEM capacity for the current TPU generation (conservative fallback)."""
    try:
        info = pltpu.get_tpu_info()
        for attr in ("vmem_capacity_bytes", "vmem_size_bytes", "vmem_bytes"):
            cap = getattr(info, attr, None)
            if cap:
                return int(cap)
    except Exception:
        pass
    return 64 << 20  # v7x is the smallest (64 MiB/TC); safe for v5e/v6e too.


def _image_proj_kernel(x_ref, w_ref, b_ref, g_ref, beta_ref, o_ref, *,
                       tokens_per_block, cross_dim):
    # x_ref:    (B, E)       full image embeddings (constant-index block)
    # w_ref:    (E, Nblk)    column block of the projection weight (Nblk = tpb*D)
    # b_ref:    (1, Nblk)    matching bias slice
    # g_ref:    (1, D)       LayerNorm gamma
    # beta_ref: (1, D)       LayerNorm beta
    # o_ref:    (B, Nblk)    lane-dense output slab for this column block
    x = x_ref[...]
    w = w_ref[...]
    if w.dtype != jnp.float32:
        # Narrow weight streaming (e.g. bf16): native low-precision MXU matmul
        # with f32 accumulation instead of promoting W to f32.
        x = x.astype(w.dtype)

    # One wide MXU matmul for the whole column block; f32 accumulation.
    y = jnp.dot(x, w, preferred_element_type=jnp.float32)       # (B, Nblk) f32

    gamma = g_ref[...].astype(jnp.float32)                        # (1, D)
    beta = beta_ref[...].astype(jnp.float32)                      # (1, D)

    D = cross_dim
    # Per-token epilogue with direct slice stores: each y slice dies immediately,
    # stores stay unmasked dense vst (D % 128 == 0 on the aligned path), and
    # token t's store overlaps token t+1's LayerNorm -- all filler under the
    # weight DMA of the next grid step.
    for t in range(tokens_per_block):                             # static slices
        lo, hi = t * D, (t + 1) * D
        yt = y[:, lo:hi] + b_ref[:, lo:hi].astype(jnp.float32)    # (B, D)
        mean = jnp.mean(yt, axis=-1, keepdims=True)
        centered = yt - mean
        var = jnp.mean(centered * centered, axis=-1, keepdims=True)
        out_t = centered * jax.lax.rsqrt(var + LN_EPS) * gamma + beta
        o_ref[:, lo:hi] = out_t.astype(o_ref.dtype)


def _pick_tokens_per_block(E, T, D, weight_bytes_per_el, weight_budget):
    """Pick tokens-per-block so the double-buffered (E, tpb*D) weight block fits
    `weight_budget`, the block divides T, partial blocks are 128-lane aligned,
    and -- when possible -- the grid has >= 2 steps (pipelining + 2-TC sharding)."""
    max_cols = max(D, weight_budget // max(1, 2 * E * weight_bytes_per_el))
    max_tpb = max(1, min(T, max_cols // D))

    def valid(t):
        if T % t != 0:
            return False
        if t == T:
            return True               # full-width block: any D is legal
        return (t * D) % 128 == 0     # partial block: must be lane aligned

    # Prefer the largest valid tpb that still gives >= 2 grid steps.
    for t in range(min(max_tpb, T // 2), 0, -1):
        if valid(t) and T // t >= 2:
            return t
    # Otherwise: largest valid tpb within budget.
    for t in range(max_tpb, 0, -1):
        if valid(t):
            return t
    # D not 128-aligned and no aligned split: full-width block is always legal.
    return T


def _vmem_limit_bytes(B, E, nblk, D, x_itemsize, w_itemsize, out_itemsize, cap):
    """Explicit scoped-VMEM limit sized to the actual double-buffered tiles."""
    sub = 8                         # sublane padding
    Bp = max(B, sub)
    lanes_d = max(D, 128)
    x_bytes = 2 * Bp * E * x_itemsize
    w_bytes = 2 * E * nblk * w_itemsize
    b_bytes = 2 * sub * nblk * 4
    gb_bytes = 2 * 2 * sub * lanes_d * 4
    out_bytes = 2 * Bp * nblk * out_itemsize
    tmp_bytes = 2 * Bp * nblk * 4   # f32 y + LN temps (generous)
    total = x_bytes + w_bytes + b_bytes + gb_bytes + out_bytes + tmp_bytes
    total = int(total * 1.25) + (2 << 20)            # headroom
    return int(min(cap, max(total, 16 << 20)))


def image_proj_model(image_embeds, w, b, gamma, beta, *, num_tokens, cross_dim):
    """image_embeds: (B, E); w: (E, T*D); b: (T*D,); gamma/beta: (D,).

    Returns (B, T, D). `w` may be f32 or bf16 (f32 accumulation either way);
    keep `b`/`gamma`/`beta` in f32 for best numerics. LayerNorm math is f32.
    """
    B, E = image_embeds.shape
    T, D = num_tokens, cross_dim
    N = T * D
    assert w.shape == (E, N) and b.shape == (N,)
    assert gamma.shape == (D,) and beta.shape == (D,)

    cap = _vmem_capacity_bytes()
    # Double-buffered weight budget: <= 1/4 of physical VMEM, never above 32 MiB
    # (v7x: 16 MiB -> 8 MiB/block; v5e/v6e: 32 MiB -> 16 MiB/block, enabled by
    # the explicit vmem_limit_bytes below even on v5e's 16 MiB default scope).
    weight_budget = min(cap // 4, 32 << 20)

    w_itemsize = jnp.dtype(w.dtype).itemsize
    tpb = _pick_tokens_per_block(E, T, D, w_itemsize, weight_budget)
    nblk = tpb * D
    grid = (T // tpb,)

    b2 = b.reshape(1, N)
    g2 = gamma.reshape(1, D)
    beta2 = beta.reshape(1, D)

    out_dtype = image_embeds.dtype
    vmem_limit = _vmem_limit_bytes(
        B, E, nblk, D,
        jnp.dtype(image_embeds.dtype).itemsize, w_itemsize,
        jnp.dtype(out_dtype).itemsize, cap)

    kernel = functools.partial(
        _image_proj_kernel, tokens_per_block=tpb, cross_dim=D)

    cost = pl.CostEstimate(
        flops=2 * B * E * N,
        transcendentals=B * T,  # one rsqrt per (batch, token)
        bytes_accessed=(E * N * w_itemsize
                        + B * E * jnp.dtype(image_embeds.dtype).itemsize
                        + B * N * jnp.dtype(out_dtype).itemsize
                        + N * 4 + 2 * D * 4),
    )

    out2d = pl.pallas_call(
        kernel,
        out_shape=jax.ShapeDtypeStruct((B, N), out_dtype),
        grid_spec=pltpu.PrefetchScalarGridSpec(
            num_scalar_prefetch=0,
            grid=grid,
            in_specs=[
                pl.BlockSpec((B, E), lambda j: (0, 0)),       # x (constant block)
                pl.BlockSpec((E, nblk), lambda j: (0, j)),    # weight column block
                pl.BlockSpec((1, nblk), lambda j: (0, j)),    # bias slice
                pl.BlockSpec((1, D), lambda j: (0, 0)),       # gamma
                pl.BlockSpec((1, D), lambda j: (0, 0)),       # beta
            ],
            out_specs=pl.BlockSpec((B, nblk), lambda j: (0, j)),
        ),
        compiler_params=pltpu.CompilerParams(
            # Column blocks are independent -> shardable across v7x's 2 TCs.
            dimension_semantics=("parallel",),
            vmem_limit_bytes=vmem_limit,
        ),
        cost_estimate=cost,
    )(image_embeds, w, b2, g2, beta2)

    # Free layout plumbing: present the (B, T, D) view outside the kernel.
    return out2d.reshape(B, T, D)


def _reference(image_embeds, w, b, gamma, beta, num_tokens, cross_dim):
    B = image_embeds.shape[0]
    y = image_embeds @ w.astype(jnp.float32) + b.astype(jnp.float32)
    y = y.reshape(B, num_tokens, cross_dim)
    mean = jnp.mean(y, axis=-1, keepdims=True)
    var = jnp.mean((y - mean) ** 2, axis=-1, keepdims=True)
    return (y - mean) / jnp.sqrt(var + LN_EPS) * gamma + beta


if __name__ == "__main__":
    # Small shapes consistent with the module's forward:
    #   batch=2, clip_embeddings_dim=256, cross_attention_dim=128, tokens=4
    B = 2
    CLIP_EMBED_DIM = 256
    CROSS_ATTN_DIM = 128
    NUM_TOKENS = 4

    key = jax.random.PRNGKey(0)
    k_x, k_w, k_b, k_g, k_beta = jax.random.split(key, 5)

    image_embeds = jax.random.normal(k_x, (B, CLIP_EMBED_DIM), dtype=jnp.float32)

    # Deterministic synthetic parameters (nn.Linear-like scale) + LayerNorm affine.
    w = jax.random.normal(
        k_w, (CLIP_EMBED_DIM, NUM_TOKENS * CROSS_ATTN_DIM), dtype=jnp.float32
    ) * (1.0 / jnp.sqrt(CLIP_EMBED_DIM))
    b = jax.random.normal(k_b, (NUM_TOKENS * CROSS_ATTN_DIM,), dtype=jnp.float32) * 0.02
    gamma = 1.0 + 0.01 * jax.random.normal(k_g, (CROSS_ATTN_DIM,), dtype=jnp.float32)
    beta = 0.01 * jax.random.normal(k_beta, (CROSS_ATTN_DIM,), dtype=jnp.float32)

    ref = _reference(image_embeds, w, b, gamma, beta, NUM_TOKENS, CROSS_ATTN_DIM)

    # f32 weights: exact-path check.
    out = image_proj_model(
        image_embeds, w, b, gamma, beta,
        num_tokens=NUM_TOKENS, cross_dim=CROSS_ATTN_DIM,
    )
    out = jax.block_until_ready(out)
    assert out.shape == (B, NUM_TOKENS, CROSS_ATTN_DIM)
    assert jnp.allclose(out, ref, atol=1e-4, rtol=1e-4), "f32 mismatch vs reference"

    # bf16 weight streaming: only W is narrowed (halves the binding HBM bytes);
    # bias / gamma / beta stay f32, accumulation is f32 in-kernel.
    out_bf16 = image_proj_model(
        image_embeds, w.astype(jnp.bfloat16), b, gamma, beta,
        num_tokens=NUM_TOKENS, cross_dim=CROSS_ATTN_DIM,
    )
    out_bf16 = jax.block_until_ready(out_bf16)
    assert float(jnp.max(jnp.abs(out_bf16 - ref))) < 0.1, "bf16 path diverged"

    print("KERNEL_OK")
</pallas_src>

<mosaic_0001>
module attributes {stable_mosaic.version = 11 : i64} {
  func.func @_image_proj_kernel(%arg0: i32, %arg1: memref<2x256xf32, #tpu.memory_space<vmem>>, %arg2: memref<256x256xf32, #tpu.memory_space<vmem>>, %arg3: memref<1x256xf32, #tpu.memory_space<vmem>>, %arg4: memref<1x128xf32, #tpu.memory_space<vmem>>, %arg5: memref<1x128xf32, #tpu.memory_space<vmem>>, %arg6: memref<2x256xf32, #tpu.memory_space<vmem>>) attributes {dimension_semantics = [#tpu.dimension_semantics<parallel>], iteration_bounds = array<i64: 2>, scalar_prefetch = 0 : i64, scratch_operands = 0 : i64, tpu.core_type = #tpu.core_type<tc>, window_params = [{pipeline_mode = #tpu.pipeline_mode<synchronous>, transform_indices = @transform_0, window_bounds = array<i64: 2, 256>}, {transform_indices = @transform_1, window_bounds = array<i64: 256, 256>}, {transform_indices = @transform_2, window_bounds = array<i64: 1, 256>}, {pipeline_mode = #tpu.pipeline_mode<synchronous>, transform_indices = @transform_3, window_bounds = array<i64: 1, 128>}, {pipeline_mode = #tpu.pipeline_mode<synchronous>, transform_indices = @transform_4, window_bounds = array<i64: 1, 128>}, {transform_indices = @transform_5, window_bounds = array<i64: 2, 256>}]} {
    %c0 = arith.constant 0 : index
    %c0_0 = arith.constant 0 : index
    %0 = vector.load %arg1[%c0, %c0_0] : memref<2x256xf32, #tpu.memory_space<vmem>>, vector<2x256xf32>
    %c0_1 = arith.constant 0 : index
    %c0_2 = arith.constant 0 : index
    %1 = vector.load %arg2[%c0_1, %c0_2] : memref<256x256xf32, #tpu.memory_space<vmem>>, vector<256x256xf32>
    %cst = arith.constant dense<0.000000e+00> : vector<2x256xf32>
    %2 = tpu.matmul %0, %1, %cst {dimension_numbers = #tpu.dot_dimension_numbers<[1], [0], [0], [1], [0, 0, 1, 1], [], []>} : vector<2x256xf32>, vector<256x256xf32>, vector<2x256xf32> -> vector<2x256xf32>
    %c0_3 = arith.constant 0 : index
    %c0_4 = arith.constant 0 : index
    %3 = vector.load %arg4[%c0_3, %c0_4] : memref<1x128xf32, #tpu.memory_space<vmem>>, vector<1x128xf32>
    %c0_5 = arith.constant 0 : index
    %c0_6 = arith.constant 0 : index
    %4 = vector.load %arg5[%c0_5, %c0_6] : memref<1x128xf32, #tpu.memory_space<vmem>>, vector<1x128xf32>
    %5 = vector.extract_strided_slice %2 {offsets = [0, 0], sizes = [2, 128], strides = [1, 1]} : vector<2x256xf32> to vector<2x128xf32>
    %c0_7 = arith.constant 0 : index
    %c0_8 = arith.constant 0 : index
    %6 = vector.load %arg3[%c0_7, %c0_8] : memref<1x256xf32, #tpu.memory_space<vmem>>, vector<1x128xf32>
    %7 = vector.broadcast %6 : vector<1x128xf32> to vector<2x128xf32>
    %8 = arith.addf %5, %7 : vector<2x128xf32>
    %cst_9 = arith.constant dense<0.000000e+00> : vector<2xf32>
    %9 = vector.multi_reduction <add>, %8, %cst_9 [1] : vector<2x128xf32> to vector<2xf32>
    %10 = vector.shape_cast %9 : vector<2xf32> to vector<2x1xf32>
    %cst_10 = arith.constant 1.280000e+02 : f32
    %11 = vector.broadcast %cst_10 : f32 to vector<2x1xf32>
    %12 = arith.divf %10, %11 : vector<2x1xf32>
    %13 = vector.broadcast %12 : vector<2x1xf32> to vector<2x128xf32>
    %14 = arith.subf %8, %13 : vector<2x128xf32>
    %15 = arith.mulf %14, %14 : vector<2x128xf32>
    %cst_11 = arith.constant dense<0.000000e+00> : vector<2xf32>
    %16 = vector.multi_reduction <add>, %15, %cst_11 [1] : vector<2x128xf32> to vector<2xf32>
    %17 = vector.shape_cast %16 : vector<2xf32> to vector<2x1xf32>
    %cst_12 = arith.constant 1.280000e+02 : f32
    %18 = vector.broadcast %cst_12 : f32 to vector<2x1xf32>
    %19 = arith.divf %17, %18 : vector<2x1xf32>
    %cst_13 = arith.constant 9.99999974E-6 : f32
    %20 = vector.broadcast %cst_13 : f32 to vector<2x1xf32>
    %21 = arith.addf %19, %20 : vector<2x1xf32>
    %22 = math.rsqrt %21 : vector<2x1xf32>
    %23 = vector.broadcast %22 : vector<2x1xf32> to vector<2x128xf32>
    %24 = arith.mulf %14, %23 : vector<2x128xf32>
    %25 = vector.broadcast %3 : vector<1x128xf32> to vector<2x128xf32>
    %26 = arith.mulf %24, %25 : vector<2x128xf32>
    %27 = vector.broadcast %4 : vector<1x128xf32> to vector<2x128xf32>
    %28 = arith.addf %26, %27 : vector<2x128xf32>
    %c0_14 = arith.constant 0 : index
    %c0_15 = arith.constant 0 : index
    %29 = vector.load %arg6[%c0_14, %c0_15] : memref<2x256xf32, #tpu.memory_space<vmem>>, vector<2x128xf32>
    tpu.vector_store %arg6[%c0_14, %c0_15], %28 {strides = array<i32>} : memref<2x256xf32, #tpu.memory_space<vmem>>, vector<2x128xf32>,
    %30 = vector.extract_strided_slice %2 {offsets = [0, 128], sizes = [2, 128], strides = [1, 1]} : vector<2x256xf32> to vector<2x128xf32>
    %c0_16 = arith.constant 0 : index
    %c128 = arith.constant 128 : index
    %31 = vector.load %arg3[%c0_16, %c128] : memref<1x256xf32, #tpu.memory_space<vmem>>, vector<1x128xf32>
    %32 = vector.broadcast %31 : vector<1x128xf32> to vector<2x128xf32>
    %33 = arith.addf %30, %32 : vector<2x128xf32>
    %cst_17 = arith.constant dense<0.000000e+00> : vector<2xf32>
    %34 = vector.multi_reduction <add>, %33, %cst_17 [1] : vector<2x128xf32> to vector<2xf32>
    %35 = vector.shape_cast %34 : vector<2xf32> to vector<2x1xf32>
    %cst_18 = arith.constant 1.280000e+02 : f32
    %36 = vector.broadcast %cst_18 : f32 to vector<2x1xf32>
    %37 = arith.divf %35, %36 : vector<2x1xf32>
    %38 = vector.broadcast %37 : vector<2x1xf32> to vector<2x128xf32>
    %39 = arith.subf %33, %38 : vector<2x128xf32>
    %40 = arith.mulf %39, %39 : vector<2x128xf32>
    %cst_19 = arith.constant dense<0.000000e+00> : vector<2xf32>
    %41 = vector.multi_reduction <add>, %40, %cst_19 [1] : vector<2x128xf32> to vector<2xf32>
    %42 = vector.shape_cast %41 : vector<2xf32> to vector<2x1xf32>
    %cst_20 = arith.constant 1.280000e+02 : f32
    %43 = vector.broadcast %cst_20 : f32 to vector<2x1xf32>
    %44 = arith.divf %42, %43 : vector<2x1xf32>
    %cst_21 = arith.constant 9.99999974E-6 : f32
    %45 = vector.broadcast %cst_21 : f32 to vector<2x1xf32>
    %46 = arith.addf %44, %45 : vector<2x1xf32>
    %47 = math.rsqrt %46 : vector<2x1xf32>
    %48 = vector.broadcast %47 : vector<2x1xf32> to vector<2x128xf32>
    %49 = arith.mulf %39, %48 : vector<2x128xf32>
    %50 = vector.broadcast %3 : vector<1x128xf32> to vector<2x128xf32>
    %51 = arith.mulf %49, %50 : vector<2x128xf32>
    %52 = vector.broadcast %4 : vector<1x128xf32> to vector<2x128xf32>
    %53 = arith.addf %51, %52 : vector<2x128xf32>
    %c0_22 = arith.constant 0 : index
    %c128_23 = arith.constant 128 : index
    %54 = vector.load %arg6[%c0_22, %c128_23] : memref<2x256xf32, #tpu.memory_space<vmem>>, vector<2x128xf32>
    tpu.vector_store %arg6[%c0_22, %c128_23], %53 {strides = array<i32>} : memref<2x256xf32, #tpu.memory_space<vmem>>, vector<2x128xf32>,
    return
  }
  func.func @transform_0(%arg0: i32) -> (i32, i32) {
    %c0_i32 = arith.constant 0 : i32
    %c0_i32_0 = arith.constant 0 : i32
    %c0_i32_1 = arith.constant 0 : i32
    return %c0_i32, %c0_i32_0 : i32, i32
  }
  func.func @transform_1(%arg0: i32) -> (i32, i32) {
    %c0_i32 = arith.constant 0 : i32
    %c0_i32_0 = arith.constant 0 : i32
    return %c0_i32, %arg0 : i32, i32
  }
  func.func @transform_2(%arg0: i32) -> (i32, i32) {
    %c0_i32 = arith.constant 0 : i32
    %c0_i32_0 = arith.constant 0 : i32
    return %c0_i32, %arg0 : i32, i32
  }
  func.func @transform_3(%arg0: i32) -> (i32, i32) {
    %c0_i32 = arith.constant 0 : i32
    %c0_i32_0 = arith.constant 0 : i32
    %c0_i32_1 = arith.constant 0 : i32
    return %c0_i32, %c0_i32_0 : i32, i32
  }
  func.func @transform_4(%arg0: i32) -> (i32, i32) {
    %c0_i32 = arith.constant 0 : i32
    %c0_i32_0 = arith.constant 0 : i32
    %c0_i32_1 = arith.constant 0 : i32
    return %c0_i32, %c0_i32_0 : i32, i32
  }
  func.func @transform_5(%arg0: i32) -> (i32, i32) {
    %c0_i32 = arith.constant 0 : i32
    %c0_i32_0 = arith.constant 0 : i32
    return %c0_i32, %arg0 : i32, i32
  }
}

</mosaic_0001>

<llo_original>
// kernel: tpu_custom_call.1
$region0: #{tpu_custom_call.1}
  #allocation0 [shape = 'u32[]', space=smem, size = 0x4, offset = 0x4, fixed_abs, tag = 'smem constant byte address 0x4 - core index']
  #allocation1 [shape = 'u32[144,128]{1,0:T(1,128)}', space=vmem, size = 0x12000, scoped, tag = 'internal scratch']
  %s0 = inlined_call_operand.hbm [shape: f32[2,256], index: 0, kind: input, shape index: {}]
  %s1 = inlined_call_operand.hbm [shape: f32[256,512], index: 1, kind: input, shape index: {}]
  %s2 = inlined_call_operand.vmem [shape: f32[1,512], index: 2, kind: input, shape index: {}]
  %s3 = inlined_call_operand.vmem [shape: f32[1,128], index: 3, kind: input, shape index: {}]
  %s4 = inlined_call_operand.vmem [shape: f32[1,128], index: 4, kind: input, shape index: {}]
  %s5 = inlined_call_operand.hbm [shape: f32[2,512], index: 5, kind: output, shape index: {}]
  %s6 = sld [smem:[#allocation0]]
  $region61: #{tpu_custom_call.1} parent=0
    _
  %s8 = ssub.s32 1, %s6
  %s9 = scalar_select 0, %s8, %s6
  $region1: #{tpu_custom_call.1} parent=0
    #allocation2 [shape = 'u8[2048]{0}', space=vmem, size = 0x800, scoped, tag = 'input window, operand 0, single buffered']
    #allocation3 [shape = 's32[2]{0}', space=sflag, size = 0x8, scoped, tag = 'scoped memory for tpu_custom_call.1']
    #allocation4 [shape = 's32[2]{0}', space=sflag, size = 0x8, scoped, tag = 'scoped memory for tpu_custom_call.1']
    #allocation5 [shape = 'u8[524288]{0}', space=vmem, size = 0x80000, scoped, tag = 'input window, operand 1']
    #allocation6 [shape = 's32[2]{0}', space=sflag, size = 0x8, scoped, tag = 'scoped memory for tpu_custom_call.1']
    #allocation7 [shape = 'u8[4096]{0}', space=vmem, size = 0x1000, scoped, tag = 'output window, operand 0']
    %10 = vsyncpa [#allocation3], 0
    %11 = vsyncpa [#allocation6], 0
    %s12 = scalar_lea.sflag [#allocation6], 1
    %13 = vsyncpa %s12, 0
    %14 = vsyncpa [#allocation4], 0
    %s15 = scalar_lea.sflag [#allocation4], 1
    %16 = vsyncpa %s15, 0
    loop: start=0, step=1, limit=4
    $region2: #{tpu_custom_call.1} parent=1 // loop_pre_header
      _
    $region3: #{tpu_custom_call.1} parent=1 // loop_header
      %s18 = sphi 0, %s22
      %p19 = scmp.ge.s32.totalorder %s18, 4
      %s26 = sphi 0, %s26
      %s28 = sphi 0, %s26
      %s29 = sphi 0, %s28
      %s43 = sphi 0, %s29
      %s49 = sphi 0, %s51
      %s52 = sphi 0, %s49
      %s53 = sphi 0, %s52
      %s69 = sphi 0, %s53
      %s75 = sphi 0, %s77
      %s78 = sphi 0, %s75
      %s79 = sphi 0, %s78
      %s95 = sphi 0, %s79
      %s99 = sphi 0, %s99
      %s101 = sphi 0, %s99
      %s102 = sphi 0, %s101
      %s116 = sphi 0, %s102
      %s120 = sphi 0, %s120
      %s122 = sphi 0, %s120
      %s123 = sphi 0, %s122
      %s137 = sphi 0, %s123
      %s143 = sphi 0, %s145
      %s146 = sphi 0, %s143
      %s147 = sphi 0, %s146
      %s163 = sphi 0, %s147
    $region4: #{tpu_custom_call.1} parent=1 // loop_header_branch
      %21 = sbr.rel (%p19) target = $region8
    $region5: #{tpu_custom_call.1} parent=1 // loop_body
      %s23 = ssub.s32 %s18, 1
      %s24 = ssub.s32 %s18, 2
      %s25 = sadd.s32 %s18, 1
      %s27 = sadd.s32 %s26, 1
      %p30 = scmp.eq.s32.totalorder %s18, 1
      %p31 = scmp.ne.s32.totalorder %s26, %s28
      %p32 = scmp.eq.s32.totalorder %s18, 0
      %p33 = por %p31, %p32
      %p34 = scmp.ne.s32.totalorder %s26, %s28
      %p35 = scmp.eq.s32.totalorder %s23, 1
      %p36 = por %p34, %p35
      %p37 = scmp.ne.s32.totalorder %s28, %s29
      %p38 = scmp.eq.s32.totalorder %s23, 0
      %p39 = por %p37, %p38
      %p40 = scmp.ne.s32.totalorder %s28, %s29
      %p41 = scmp.eq.s32.totalorder %s24, 1
      %p42 = por %p40, %p41
      %p44 = scmp.ne.s32.totalorder %s29, %s43
      %p45 = scmp.eq.s32.totalorder %s24, 0
      %p46 = por %p44, %p45
      %s47 = ssub.s32 %s18, %s25
      %p48 = scmp.eq.s32.totalorder %s47, 0
      %s50 = sadd.s32 %s49, 1
      %s51 = scalar_select %p48, %s49, %s50
      %p54 = pneg %p48
      %p55 = scmp.eq.s32.totalorder %s18, 1
      %p56 = por %p54, %p55
      %p57 = scmp.ne.s32.totalorder %s49, %s52
      %p58 = scmp.eq.s32.totalorder %s18, 0
      %p59 = por %p57, %p58
      %p60 = scmp.ne.s32.totalorder %s49, %s52
      %p61 = scmp.eq.s32.totalorder %s23, 1
      %p62 = por %p60, %p61
      %p63 = scmp.ne.s32.totalorder %s52, %s53
      %p64 = scmp.eq.s32.totalorder %s23, 0
      %p65 = por %p63, %p64
      %p66 = scmp.ne.s32.totalorder %s52, %s53
      %p67 = scmp.eq.s32.totalorder %s24, 1
      %p68 = por %p66, %p67
      %p70 = scmp.ne.s32.totalorder %s53, %s69
      %p71 = scmp.eq.s32.totalorder %s24, 0
      %p72 = por %p70, %p71
      %s73 = ssub.s32 %s18, %s25
      %p74 = scmp.eq.s32.totalorder %s73, 0
      %s76 = sadd.s32 %s75, 1
      %s77 = scalar_select %p74, %s75, %s76
      %p80 = pneg %p74
      %p81 = scmp.eq.s32.totalorder %s18, 1
      %p82 = por %p80, %p81
      %p83 = scmp.ne.s32.totalorder %s75, %s78
      %p84 = scmp.eq.s32.totalorder %s18, 0
      %p85 = por %p83, %p84
      %p86 = scmp.ne.s32.totalorder %s75, %s78
      %p87 = scmp.eq.s32.totalorder %s23, 1
      %p88 = por %p86, %p87
      %p89 = scmp.ne.s32.totalorder %s78, %s79
      %p90 = scmp.eq.s32.totalorder %s23, 0
      %p91 = por %p89, %p90
      %p92 = scmp.ne.s32.totalorder %s78, %s79
      %p93 = scmp.eq.s32.totalorder %s24, 1
      %p94 = por %p92, %p93
      %p96 = scmp.ne.s32.totalorder %s79, %s95
      %p97 = scmp.eq.s32.totalorder %s24, 0
      %p98 = por %p96, %p97
      %s100 = sadd.s32 %s99, 1
      %p103 = scmp.eq.s32.totalorder %s18, 1
      %p104 = scmp.ne.s32.totalorder %s99, %s101
      %p105 = scmp.eq.s32.totalorder %s18, 0
      %p106 = por %p104, %p105
      %p107 = scmp.ne.s32.totalorder %s99, %s101
      %p108 = scmp.eq.s32.totalorder %s23, 1
      %p109 = por %p107, %p108
      %p110 = scmp.ne.s32.totalorder %s101, %s102
      %p111 = scmp.eq.s32.totalorder %s23, 0
      %p112 = por %p110, %p111
      %p113 = scmp.ne.s32.totalorder %s101, %s102
      %p114 = scmp.eq.s32.totalorder %s24, 1
      %p115 = por %p113, %p114
      %p117 = scmp.ne.s32.totalorder %s102, %s116
      %p118 = scmp.eq.s32.totalorder %s24, 0
      %p119 = por %p117, %p118
      %s121 = sadd.s32 %s120, 1
      %p124 = scmp.eq.s32.totalorder %s18, 1
      %p125 = scmp.ne.s32.totalorder %s120, %s122
      %p126 = scmp.eq.s32.totalorder %s18, 0
      %p127 = por %p125, %p126
      %p128 = scmp.ne.s32.totalorder %s120, %s122
      %p129 = scmp.eq.s32.totalorder %s23, 1
      %p130 = por %p128, %p129
      %p131 = scmp.ne.s32.totalorder %s122, %s123
      %p132 = scmp.eq.s32.totalorder %s23, 0
      %p133 = por %p131, %p132
      %p134 = scmp.ne.s32.totalorder %s122, %s123
      %p135 = scmp.eq.s32.totalorder %s24, 1
      %p136 = por %p134, %p135
      %p138 = scmp.ne.s32.totalorder %s123, %s137
      %p139 = scmp.eq.s32.totalorder %s24, 0
      %p140 = por %p138, %p139
      %s141 = ssub.s32 %s18, %s25
      %p142 = scmp.eq.s32.totalorder %s141, 0
      %s144 = sadd.s32 %s143, 1
      %s145 = scalar_select %p142, %s143, %s144
      %p148 = pneg %p142
      %p149 = scmp.eq.s32.totalorder %s18, 1
      %p150 = por %p148, %p149
      %p151 = scmp.ne.s32.totalorder %s143, %s146
      %p152 = scmp.eq.s32.totalorder %s18, 0
      %p153 = por %p151, %p152
      %p154 = scmp.ne.s32.totalorder %s143, %s146
      %p155 = scmp.eq.s32.totalorder %s23, 1
      %p156 = por %p154, %p155
      %p157 = scmp.ne.s32.totalorder %s146, %s147
      %p158 = scmp.eq.s32.totalorder %s23, 0
      %p159 = por %p157, %p158
      %p160 = scmp.ne.s32.totalorder %s146, %s147
      %p161 = scmp.eq.s32.totalorder %s24, 1
      %p162 = por %p160, %p161
      %p164 = scmp.ne.s32.totalorder %s147, %s163
      %p165 = scmp.eq.s32.totalorder %s24, 0
      %p166 = por %p164, %p165
      %p167 = scmp.le.s32.totalorder 1, %s18
      %p168 = scmp.lt.s32.totalorder %s18, 3
      %p169 = pnand %p167, %p168
      %p170 = pneg %p169
      // Predicated region
      $region9: #{tpu_custom_call.1} parent=5 // pred_check
        _
      $region10: #{tpu_custom_call.1} parent=5 // pred_check_branch
        %172 = sbr.rel (%p169) target = $region12
      $region11: #{tpu_custom_call.1} parent=5 // pred_region
        %s173 = ssub.s32 %s18, 1
        // Predicated region
        $region13: #{tpu_custom_call.1} parent=11 // pred_check
          %p174 = pneg %p39
        $region14: #{tpu_custom_call.1} parent=11 // pred_check_branch
          %176 = sbr.rel (%p174) target = $region16
        $region15: #{tpu_custom_call.1} parent=11 // pred_region
          %s178 = ssub.s32 64, 64
          %179 = vsyncadd [#allocation3], %s178
          %s181 = sshll.u32 [#allocation2], 4
          %s182 = int_to_ptr.vmem [resolvable:$true] %s181
          %184 = dma.hbm_to_vmem [thread:$0]  %s0, 64, %s182, [#allocation3]
        $region16: #{tpu_custom_call.1} parent=11 // pred_fallthru
          _
        // Predicated region
        $region17: #{tpu_custom_call.1} parent=11 // pred_check
          %p185 = pneg %p112
        $region18: #{tpu_custom_call.1} parent=11 // pred_check_branch
          %187 = sbr.rel (%p185) target = $region20
        $region19: #{tpu_custom_call.1} parent=11 // pred_region
          _
        $region20: #{tpu_custom_call.1} parent=11 // pred_fallthru
          _
        // Predicated region
        $region21: #{tpu_custom_call.1} parent=11 // pred_check
          %p188 = pneg %p133
        $region22: #{tpu_custom_call.1} parent=11 // pred_check_branch
          %190 = sbr.rel (%p188) target = $region24
        $region23: #{tpu_custom_call.1} parent=11 // pred_region
          _
        $region24: #{tpu_custom_call.1} parent=11 // pred_fallthru
          _
      $region12: #{tpu_custom_call.1} parent=5 // pred_fallthru
        _
      %p191 = scmp.lt.s32.totalorder %s18, 2
      // Predicated region
      $region25: #{tpu_custom_call.1} parent=5 // pred_check
        %p192 = pneg %p191
      $region26: #{tpu_custom_call.1} parent=5 // pred_check_branch
        %194 = sbr.rel (%p192) target = $region28
      $region27: #{tpu_custom_call.1} parent=5 // pred_region
        // Predicated region
        $region29: #{tpu_custom_call.1} parent=27 // pred_check
          %p195 = pneg %p59
        $region30: #{tpu_custom_call.1} parent=27 // pred_check_branch
          %197 = sbr.rel (%p195) target = $region32
        $region31: #{tpu_custom_call.1} parent=27 // pred_region
          %s198 = sand.u32 %s49, 1
          %s199 = scalar_lea.sflag [#allocation6], %s198
          %s200 = sand.u32 %s49, 1
          %s201 = smul.addr %s200, 512
          %s202 = scalar_lea.vmem [#allocation5], %s201
          %s203 = smul.u32 2, %s18
          %s205 = ssub.s32 8192, 8192
          %206 = vsyncadd %s199, %s205
          %s207 = smul.addr %s203, 128
          %s208 = scalar_lea.hbm %s1, %s207
          %s209 = sshll.u32 %s202, 4
          %s210 = int_to_ptr.vmem [resolvable:$true] %s209
          %215 = dma.hbm_to_vmem [thread:$0]  %s208, 8192, %s210, %s199, 512, 256, 16
        $region32: #{tpu_custom_call.1} parent=27 // pred_fallthru
          _
        // Predicated region
        $region33: #{tpu_custom_call.1} parent=27 // pred_check
          %p216 = pneg %p85
        $region34: #{tpu_custom_call.1} parent=27 // pred_check_branch
          %218 = sbr.rel (%p216) target = $region36
        $region35: #{tpu_custom_call.1} parent=27 // pred_region
          %s219 = smul.u32 2, %s18
          %p220 = scmp.lt.s32.totalorder %s219, 3
          %s221 = scalar_select %p220, %s219, 3
          %s222 = scalar_lea.vmem %s2, %s221
          %s223 = smul.u32 2, %s18
        $region36: #{tpu_custom_call.1} parent=27 // pred_fallthru
          _
      $region28: #{tpu_custom_call.1} parent=5 // pred_fallthru
        _
      %p224 = scmp.le.s32.totalorder 1, %s18
      %p225 = scmp.lt.s32.totalorder %s18, 3
      %p226 = pnand %p224, %p225
      %p227 = pneg %p226
      // Predicated region
      $region37: #{tpu_custom_call.1} parent=5 // pred_check
        _
      $region38: #{tpu_custom_call.1} parent=5 // pred_check_branch
        %229 = sbr.rel (%p226) target = $region40
      $region39: #{tpu_custom_call.1} parent=5 // pred_region
        %s230 = ssub.s32 %s18, 1
        // Predicated region
        $region41: #{tpu_custom_call.1} parent=39 // pred_check
          %p231 = pneg %p39
        $region42: #{tpu_custom_call.1} parent=39 // pred_check_branch
          %233 = sbr.rel (%p231) target = $region44
        $region43: #{tpu_custom_call.1} parent=39 // pred_region
          %234 = dma.done [#allocation3], 64
        $region44: #{tpu_custom_call.1} parent=39 // pred_fallthru
          _
        %s235 = sand.u32 %s52, 1
        %s236 = scalar_lea.sflag [#allocation6], %s235
        %s237 = sand.u32 %s52, 1
        %s238 = smul.addr %s237, 512
        %s239 = scalar_lea.vmem [#allocation5], %s238
        // Predicated region
        $region45: #{tpu_custom_call.1} parent=39 // pred_check
          %p240 = pneg %p65
        $region46: #{tpu_custom_call.1} parent=39 // pred_check_branch
          %242 = sbr.rel (%p240) target = $region48
        $region47: #{tpu_custom_call.1} parent=39 // pred_region
          %243 = dma.done %s236, 8192
        $region48: #{tpu_custom_call.1} parent=39 // pred_fallthru
          _
        %p244 = pneg %p39
        %p245 = pneg %p36
        %s246 = sand.u32 %s52, 1
        %s247 = scalar_lea.sflag [#allocation6], %s246
        %s248 = sand.u32 %s52, 1
        %s249 = smul.addr %s248, 512
        %s250 = scalar_lea.vmem [#allocation5], %s249
        %p251 = pneg %p65
        %p252 = pneg %p62
        %s253 = smul.u32 2, %s23
        %p254 = scmp.lt.s32.totalorder %s253, 3
        %s255 = scalar_select %p254, %s253, 3
        %s256 = scalar_lea.vmem %s2, %s255
        %p257 = pneg %p91
        %p258 = pneg %p88
        %p259 = pneg %p112
        %p260 = pneg %p109
        %p261 = pneg %p133
        %p262 = pneg %p130
        %p263 = pneg %p159
        %p264 = pneg %p156
        %s265 = sand.u32 %s146, 1
        %s266 = scalar_lea.sflag [#allocation4], %s265
        %s267 = sand.u32 %s146, 1
        %s268 = smul.addr %s267, 4
        %s269 = scalar_lea.vmem [#allocation7], %s268
        %s270 = smul.u32 2, %s23
        %s271 = smul.u32 2, %s23
        %p272 = scmp.lt.s32.totalorder %s271, 3
        %s273 = scalar_select %p272, %s271, 3
        %s274 = scalar_lea.vmem %s2, %s273
        %s275 = smul.u32 2, %s23
        %s276 = smul.u32 2, %s23
        %v277 = vld [vmem:[#allocation2] sm:$0xf]
        %v278 = vld [vmem:[%s239] sm:$0xff]
        %v279 = vld [vmem:[%s239 + $0x8] sm:$0xff]
        %v280 = vld [vmem:[%s239 + $0x10] sm:$0xff]
        %v281 = vld [vmem:[%s239 + $0x18] sm:$0xff]
        %v282 = vld [vmem:[%s239 + $0x20] sm:$0xff]
        %v283 = vld [vmem:[%s239 + $0x28] sm:$0xff]
        %v284 = vld [vmem:[%s239 + $0x30] sm:$0xff]
        %v285 = vld [vmem:[%s239 + $0x38] sm:$0xff]
        %v286 = vld [vmem:[%s239 + $0x40] sm:$0xff]
        %v287 = vld [vmem:[%s239 + $0x48] sm:$0xff]
        %v288 = vld [vmem:[%s239 + $0x50] sm:$0xff]
        %v289 = vld [vmem:[%s239 + $0x58] sm:$0xff]
        %v290 = vld [vmem:[%s239 + $0x60] sm:$0xff]
        %v291 = vld [vmem:[%s239 + $0x68] sm:$0xff]
        %v292 = vld [vmem:[%s239 + $0x70] sm:$0xff]
        %v293 = vld [vmem:[%s239 + $0x78] sm:$0xff]
        %v294 = vld [vmem:[%s239 + $0x80] sm:$0xff]
        %v295 = vld [vmem:[%s239 + $0x88] sm:$0xff]
        %v296 = vld [vmem:[%s239 + $0x90] sm:$0xff]
        %v297 = vld [vmem:[%s239 + $0x98] sm:$0xff]
        %v298 = vld [vmem:[%s239 + $0xa0] sm:$0xff]
        %v299 = vld [vmem:[%s239 + $0xa8] sm:$0xff]
        %v300 = vld [vmem:[%s239 + $0xb0] sm:$0xff]
        %v301 = vld [vmem:[%s239 + $0xb8] sm:$0xff]
        %v302 = vld [vmem:[%s239 + $0xc0] sm:$0xff]
        %v303 = vld [vmem:[%s239 + $0xc8] sm:$0xff]
        %v304 = vld [vmem:[%s239 + $0xd0] sm:$0xff]
        %v305 = vld [vmem:[%s239 + $0xd8] sm:$0xff]
        %v306 = vld [vmem:[%s239 + $0xe0] sm:$0xff]
        %v307 = vld [vmem:[%s239 + $0xe8] sm:$0xff]
        %v308 = vld [vmem:[%s239 + $0xf0] sm:$0xff]
        %v309 = vld [vmem:[%s239 + $0xf8] sm:$0xff]
        %v310 = vld [vmem:[%s239 + $0x100] sm:$0xff]
        %v311 = vld [vmem:[%s239 + $0x108] sm:$0xff]
        %v312 = vld [vmem:[%s239 + $0x110] sm:$0xff]
        %v313 = vld [vmem:[%s239 + $0x118] sm:$0xff]
        %v314 = vld [vmem:[%s239 + $0x120] sm:$0xff]
        %v315 = vld [vmem:[%s239 + $0x128] sm:$0xff]
        %v316 = vld [vmem:[%s239 + $0x130] sm:$0xff]
        %v317 = vld [vmem:[%s239 + $0x138] sm:$0xff]
        %v318 = vld [vmem:[%s239 + $0x140] sm:$0xff]
        %v319 = vld [vmem:[%s239 + $0x148] sm:$0xff]
        %v320 = vld [vmem:[%s239 + $0x150] sm:$0xff]
        %v321 = vld [vmem:[%s239 + $0x158] sm:$0xff]
        %v322 = vld [vmem:[%s239 + $0x160] sm:$0xff]
        %v323 = vld [vmem:[%s239 + $0x168] sm:$0xff]
        %v324 = vld [vmem:[%s239 + $0x170] sm:$0xff]
        %v325 = vld [vmem:[%s239 + $0x178] sm:$0xff]
        %v326 = vld [vmem:[%s239 + $0x180] sm:$0xff]
        %v327 = vld [vmem:[%s239 + $0x188] sm:$0xff]
        %v328 = vld [vmem:[%s239 + $0x190] sm:$0xff]
        %v329 = vld [vmem:[%s239 + $0x198] sm:$0xff]
        %v330 = vld [vmem:[%s239 + $0x1a0] sm:$0xff]
        %v331 = vld [vmem:[%s239 + $0x1a8] sm:$0xff]
        %v332 = vld [vmem:[%s239 + $0x1b0] sm:$0xff]
        %v333 = vld [vmem:[%s239 + $0x1b8] sm:$0xff]
        %v334 = vld [vmem:[%s239 + $0x1c0] sm:$0xff]
        %v335 = vld [vmem:[%s239 + $0x1c8] sm:$0xff]
        %v336 = vld [vmem:[%s239 + $0x1d0] sm:$0xff]
        %v337 = vld [vmem:[%s239 + $0x1d8] sm:$0xff]
        %v338 = vld [vmem:[%s239 + $0x1e0] sm:$0xff]
        %v339 = vld [vmem:[%s239 + $0x1e8] sm:$0xff]
        %v340 = vld [vmem:[%s239 + $0x1f0] sm:$0xff]
        %v341 = vld [vmem:[%s239 + $0x1f8] sm:$0xff]
        %v344 = vunpack.c.l.s4 1983009808
        %v345 = vunpack.c.0.s8 %v344
        %v346 = vlaneseq
        %v347 = vshrl.u32 %v346, 7
        %v348 = vsub.s32 %v345, %v347
        %v349 = vrot.slane %v277, %v348
        %v350 = vcombine.high %v349, %v349
        %353 = vmatprep.subr.mxu0 %v279
        %354 = vmatpush1.msra.mxu0 %v278
        %355 = vmatprep.subr.mxu0 %v281
        %356 = vmatpush1.msra.mxu0 %v280
        %357 = vmatprep.subr.mxu0 %v283
        %358 = vmatpush1.msra.mxu0 %v282
        %359 = vmatprep.subr.mxu0 %v285
        %360 = vmatpush1.msra.mxu0 %v284
        %361 = vmatprep.subr.mxu0 %v287
        %362 = vmatpush1.msra.mxu0 %v286
        %363 = vmatprep.subr.mxu0 %v289
        %364 = vmatpush1.msra.mxu0 %v288
        %365 = vmatprep.subr.mxu0 %v291
        %366 = vmatpush1.msra.mxu0 %v290
        %367 = vmatprep.subr.mxu0 %v293
        %368 = vmatpush1.msra.mxu0 %v292
        %369 = vmatprep.subr.mxu0 %v295
        %370 = vmatpush1.msra.mxu0 %v294
        %371 = vmatprep.subr.mxu0 %v297
        %372 = vmatpush1.msra.mxu0 %v296
        %373 = vmatprep.subr.mxu0 %v299
        %374 = vmatpush1.msra.mxu0 %v298
        %375 = vmatprep.subr.mxu0 %v301
        %376 = vmatpush1.msra.mxu0 %v300
        %377 = vmatprep.subr.mxu0 %v303
        %378 = vmatpush1.msra.mxu0 %v302
        %379 = vmatprep.subr.mxu0 %v305
        %380 = vmatpush1.msra.mxu0 %v304
        %381 = vmatprep.subr.mxu0 %v307
        %382 = vmatpush1.msra.mxu0 %v306
        %383 = vmatprep.subr.mxu0 %v309
        %384 = vmatpush1.msra.mxu0 %v308
        %385 = vmatprep.subr.mxu0 %v311
        %386 = vmatpush1.msra.mxu0 %v310
        %387 = vmatprep.subr.mxu0 %v313
        %388 = vmatpush1.msra.mxu0 %v312
        %389 = vmatprep.subr.mxu0 %v315
        %390 = vmatpush1.msra.mxu0 %v314
        %391 = vmatprep.subr.mxu0 %v317
        %392 = vmatpush1.msra.mxu0 %v316
        %393 = vmatprep.subr.mxu0 %v319
        %394 = vmatpush1.msra.mxu0 %v318
        %395 = vmatprep.subr.mxu0 %v321
        %396 = vmatpush1.msra.mxu0 %v320
        %397 = vmatprep.subr.mxu0 %v323
        %398 = vmatpush1.msra.mxu0 %v322
        %399 = vmatprep.subr.mxu0 %v325
        %400 = vmatpush1.msra.mxu0 %v324
        %401 = vmatprep.subr.mxu0 %v327
        %402 = vmatpush1.msra.mxu0 %v326
        %403 = vmatprep.subr.mxu0 %v329
        %404 = vmatpush1.msra.mxu0 %v328
        %405 = vmatprep.subr.mxu0 %v331
        %406 = vmatpush1.msra.mxu0 %v330
        %407 = vmatprep.subr.mxu0 %v333
        %408 = vmatpush1.msra.mxu0 %v332
        %409 = vmatprep.subr.mxu0 %v335
        %410 = vmatpush1.msra.mxu0 %v334
        %411 = vmatprep.subr.mxu0 %v337
        %412 = vmatpush1.msra.mxu0 %v336
        %413 = vmatprep.subr.mxu0 %v339
        %414 = vmatpush1.msra.mxu0 %v338
        %415 = vmatprep.subr.mxu0 %v341
        %416 = vmatpush1.msra.mxu0 %v340
        %417 = vmatprep.mubr.f32.mxu0 %v350
        %418 = vmatmul.mubr.f32.gmra.mrb[0].mxu0 %v349
        %v419 = vpop.f32.mrb[0].mxu0
        %v420 = vadd.f32 0.0, %v419
        %v421 = vpop.f32.mrb[0].mxu0
        %v422 = vadd.f32 0.0, %v421
        %423 = vdwg.mxu0
        %v424 = vld [vmem:[%s3] sm:$0x1]
        %v425 = vld [vmem:[%s4] sm:$0x1]
        %v426 = vld [vmem:[%s274] sm:$0x1]
        %v428 = vlaneseq
        %v429 = vshrl.u32 %v428, 7
        %v430 = vsub.s32 0, %v429
        %v431 = vrot.slane %v426, %v430
        %v433 = vadd.f32 %v420, %v431
        %vm434 = vcmask 1041408
        %v435 = vsel %vm434, %v433, 0.0
        %436 = vadd.xlane.f32.xlu0 %v435
        %v437 = vpop.xlane.xlu0 %436
        %v438 = vrcp.pop 128.0
        %v439 = vmul.f32 %v437, %v438
        %v440 = vsub.f32 %v433, %v439
        %v441 = vmul.f32 %v440, %v440
        %v442 = vsel %vm434, %v441, 0.0
        %443 = vadd.xlane.f32.xlu0 %v442
        %v444 = vpop.xlane.xlu0 %443
        %v445 = vmul.f32 %v444, %v438
        %v446 = vadd.f32 %v445, 1e-05
        %v447 = vrsqrt.pop %v446
        %v448 = vmul.f32 %v440, %v447
        %v450 = vlaneseq
        %v451 = vshrl.u32 %v450, 7
        %v452 = vsub.s32 0, %v451
        %v453 = vrot.slane %v424, %v452
        %v455 = vmul.f32 %v448, %v453
        %v457 = vlaneseq
        %v458 = vshrl.u32 %v457, 7
        %v459 = vsub.s32 0, %v458
        %v460 = vrot.slane %v425, %v459
        %v462 = vadd.f32 %v455, %v460
        %463 = vst [vmem:[%s269] sm:$0x3] %v462
        %v464 = vld [vmem:[%s274 + $0x1] sm:$0x1]
        %v466 = vlaneseq
        %v467 = vshrl.u32 %v466, 7
        %v468 = vsub.s32 0, %v467
        %v469 = vrot.slane %v464, %v468
        %v471 = vadd.f32 %v422, %v469
        %v472 = vsel %vm434, %v471, 0.0
        %473 = vadd.xlane.f32.xlu0 %v472
        %v474 = vpop.xlane.xlu0 %473
        %v475 = vmul.f32 %v474, %v438
        %v476 = vsub.f32 %v471, %v475
        %v477 = vmul.f32 %v476, %v476
        %v478 = vsel %vm434, %v477, 0.0
        %479 = vadd.xlane.f32.xlu0 %v478
        %v480 = vpop.xlane.xlu0 %479
        %v481 = vmul.f32 %v480, %v438
        %v482 = vadd.f32 %v481, 1e-05
        %v483 = vrsqrt.pop %v482
        %v484 = vmul.f32 %v476, %v483
        %v485 = vmul.f32 %v484, %v453
        %v486 = vadd.f32 %v485, %v460
        %487 = vst [vmem:[%s269 + $0x2] sm:$0x3] %v486
        %s488 = sand.u32 %s146, 1
        %s489 = scalar_lea.sflag [#allocation4], %s488
        %s490 = sand.u32 %s146, 1
        %s491 = smul.addr %s490, 4
        %s492 = scalar_lea.vmem [#allocation7], %s491
        // Predicated region
        $region49: #{tpu_custom_call.1} parent=39 // pred_check
          %p493 = pneg %p156
        $region50: #{tpu_custom_call.1} parent=39 // pred_check_branch
          %495 = sbr.rel (%p493) target = $region52
        $region51: #{tpu_custom_call.1} parent=39 // pred_region
          %s496 = smul.u32 2, %s23
          %s498 = ssub.s32 64, 64
          %499 = vsyncadd %s489, %s498
          %s500 = smul.addr %s496, 32
          %s501 = scalar_lea.hbm %s5, %s500
          %s503 = sshll.u32 %s492, 4
          %s504 = int_to_ptr.vmem [resolvable:$true] %s503
          %506 = dma.vmem_to_hbm [thread:$0]  %s504, 64, %s501, %s489
        $region52: #{tpu_custom_call.1} parent=39 // pred_fallthru
          _
      $region40: #{tpu_custom_call.1} parent=5 // pred_fallthru
        _
      %p507 = scmp.le.s32.totalorder 2, %s18
      // Predicated region
      $region53: #{tpu_custom_call.1} parent=5 // pred_check
        %p508 = pneg %p507
      $region54: #{tpu_custom_call.1} parent=5 // pred_check_branch
        %510 = sbr.rel (%p508) target = $region56
      $region55: #{tpu_custom_call.1} parent=5 // pred_region
        %s511 = ssub.s32 %s18, 2
        // Predicated region
        $region57: #{tpu_custom_call.1} parent=55 // pred_check
          %p512 = pneg %p162
        $region58: #{tpu_custom_call.1} parent=55 // pred_check_branch
          %514 = sbr.rel (%p512) target = $region60
        $region59: #{tpu_custom_call.1} parent=55 // pred_region
          %s515 = sand.u32 %s147, 1
          %s516 = scalar_lea.sflag [#allocation4], %s515
          %s517 = sand.u32 %s147, 1
          %s518 = smul.addr %s517, 4
          %s519 = scalar_lea.vmem [#allocation7], %s518
          %520 = dma.done %s516, 64
        $region60: #{tpu_custom_call.1} parent=55 // pred_fallthru
          _
      $region56: #{tpu_custom_call.1} parent=5 // pred_fallthru
        _
    $region6: #{tpu_custom_call.1} parent=1 // loop_footer
      %s22 = sadd.s32 1, %s18
    $region7: #{tpu_custom_call.1} parent=1 // loop_footer_branch
      %17 = sbr.rel target = $region3
    $region8: #{tpu_custom_call.1} parent=1 // loop_exit
      _
    %521 = vsyncpa [#allocation3], 1
    %s522 = scalar_lea.sflag [#allocation3], 1
    %523 = vsyncpa %s522, 1
    %524 = vsyncpa [#allocation6], 1
    %s525 = scalar_lea.sflag [#allocation6], 1
    %526 = vsyncpa %s525, 1
    %527 = vsyncpa [#allocation4], 1
    %s528 = scalar_lea.sflag [#allocation4], 1
    %529 = vsyncpa %s528, 1

</llo_original>
